<compile_context>
chip_gen: v5e
topology: v5e:2x2
jax: 0.10.0
libtpu: 0.0.40
codegen_flags: <defaults>
</compile_context>

<pallas_src>
import math

import jax
import jax.numpy as jnp
from jax.experimental import pallas as pl
from jax.experimental.pallas import tpu as pltpu

LANE = 128


def _round_up(x, m):
    return ((x + m - 1) // m) * m


# ---------------------------------------------------------------------------
# Kernel
# ---------------------------------------------------------------------------
def wpi_dec_kernel(feat_ref, tgt_ref,
                   w1f_ref, ew1_ref, b1_ref,
                   w2_ref, b2_ref, wm_ref, bm_ref,
                   out_ref):
    feat = feat_ref[...]                                   # (TB, F)  f32
    tgt = tgt_ref[...]                                     # (TB, 1)  int32
    tb = feat.shape[0]
    n_cls = ew1_ref.shape[0]

    # Embedding lookup folded into layer 1: one-hot(target) @ (cls_emb @ W1_emb).
    class_ids = jax.lax.broadcasted_iota(jnp.int32, (tb, n_cls), 1)
    onehot = (tgt == class_ids).astype(jnp.float32)        # (TB, C)

    h1 = jnp.tanh(
        jnp.dot(feat, w1f_ref[...], preferred_element_type=jnp.float32)
        + jnp.dot(onehot, ew1_ref[...], preferred_element_type=jnp.float32)
        + b1_ref[...])                                     # (TB, Hp)
    h2 = jnp.tanh(
        jnp.dot(h1, w2_ref[...], preferred_element_type=jnp.float32)
        + b2_ref[...])                                     # (TB, Hp)
    mean = jnp.dot(h2, wm_ref[...],
                   preferred_element_type=jnp.float32) + bm_ref[...]   # (TB, Cp)
    out_ref[...] = jax.nn.sigmoid(mean)


# ---------------------------------------------------------------------------
# Wrapper
# ---------------------------------------------------------------------------
def prepare_params(params, feat_dim):
    """One-time host prep: fold cls_emb into W1 and pad lane dims to 128.

    Zero-padding is exact: padded hidden columns are tanh(0)=0 and contribute
    nothing downstream; padded output columns are sliced off by the wrapper.
    """
    w1, b1 = params["w1"], params["b1"]       # (F+C, H), (1, H)
    w2, b2 = params["w2"], params["b2"]       # (H, H),  (1, H)
    wm, bm = params["wm"], params["bm"]       # (H, C),  (1, C)
    emb = params["cls_emb"]                   # (C, C)

    in_dim, h = w1.shape
    c = emb.shape[0]
    assert in_dim == feat_dim + c, "input dim must equal feat_dim + output"

    w1_feat = w1[:feat_dim]                   # (F, H)
    emb_w1 = emb @ w1[feat_dim:]              # (C, H)  embedding folded into W1

    hp = _round_up(h, LANE)
    cp = _round_up(c, LANE)

    def pad2(a, rows, cols):
        return jnp.pad(a, ((0, rows - a.shape[0]), (0, cols - a.shape[1])))

    return dict(
        w1_feat=pad2(w1_feat, feat_dim, hp),
        emb_w1=pad2(emb_w1, c, hp),
        b1=pad2(b1, 1, hp),
        w2=pad2(w2, hp, hp),
        b2=pad2(b2, 1, hp),
        wm=pad2(wm, hp, cp),
        bm=pad2(bm, 1, cp),
        n_cls=c, hp=hp, cp=cp,
    )


def wpi_dec_forward(feat, target, fused, *, tile_b=512):
    """feat: (B, F) f32, target: (B,) int — returns (B, output) f32."""
    b, f = feat.shape
    c, cp = fused["n_cls"], fused["cp"]

    tile_b = min(tile_b, _round_up(b, 8))     # tile must be a multiple of 8
    bp = _round_up(b, tile_b)

    feat_p = jnp.pad(feat.astype(jnp.float32), ((0, bp - b), (0, 0)))
    tgt_p = jnp.pad(target.astype(jnp.int32), (0, bp - b)).reshape(bp, 1)

    def resident(a):                          # weights: constant block index
        return pl.BlockSpec(a.shape, lambda i: (0, 0))

    out = pl.pallas_call(
        wpi_dec_kernel,
        out_shape=jax.ShapeDtypeStruct((bp, cp), jnp.float32),
        grid=(bp // tile_b,),
        in_specs=[
            pl.BlockSpec((tile_b, f), lambda i: (i, 0)),   # feat tile
            pl.BlockSpec((tile_b, 1), lambda i: (i, 0)),   # target tile
            resident(fused["w1_feat"]),
            resident(fused["emb_w1"]),
            resident(fused["b1"]),
            resident(fused["w2"]),
            resident(fused["b2"]),
            resident(fused["wm"]),
            resident(fused["bm"]),
        ],
        out_specs=pl.BlockSpec((tile_b, cp), lambda i: (i, 0)),
        compiler_params=pltpu.CompilerParams(
            dimension_semantics=("parallel",)),            # megacore on v7x
    )(feat_p, tgt_p,
      fused["w1_feat"], fused["emb_w1"], fused["b1"],
      fused["w2"], fused["b2"], fused["wm"], fused["bm"])

    return out[:b, :c]


# ---------------------------------------------------------------------------
# Init + pure-JAX reference
# ---------------------------------------------------------------------------
def init_params(key, input_dim, hidden1, output):
    """Mirror wpi_dec.__init__/init_weights (xavier_normal weights, zero bias,
    N(0,1) embedding). Weights stored as (in, out) so the kernel computes
    x @ W + b."""
    k1, k2, k3, k4 = jax.random.split(key, 4)

    def xavier(k, fan_in, fan_out):
        std = math.sqrt(2.0 / (fan_in + fan_out))
        return std * jax.random.normal(k, (fan_in, fan_out), jnp.float32)

    return dict(
        w1=xavier(k1, input_dim, hidden1),
        b1=jnp.zeros((1, hidden1), jnp.float32),
        w2=xavier(k2, hidden1, hidden1),
        b2=jnp.zeros((1, hidden1), jnp.float32),
        wm=xavier(k3, hidden1, output),
        bm=jnp.zeros((1, output), jnp.float32),
        cls_emb=jax.random.normal(k4, (output, output), jnp.float32),
    )


def wpi_dec_reference(feat, target, params):
    temb = params["cls_emb"][target]
    x = jnp.concatenate([feat, temb], axis=-1)
    h1 = jnp.tanh(x @ params["w1"] + params["b1"])
    h2 = jnp.tanh(h1 @ params["w2"] + params["b2"])
    mean = h2 @ params["wm"] + params["bm"]
    return jax.nn.sigmoid(mean)


# ---------------------------------------------------------------------------
# Self-test
# ---------------------------------------------------------------------------
if __name__ == "__main__":
    FEAT = 24      # feat dimension
    OUTPUT = 8     # number of classes == embedding dim == output dim
    INPUT = FEAT + OUTPUT   # 32, linear1 input size
    HIDDEN1 = 32

    key = jax.random.PRNGKey(0)
    kp, kf, kt, kf2, kt2 = jax.random.split(key, 5)

    params = init_params(kp, INPUT, HIDDEN1, OUTPUT)
    fused = prepare_params(params, FEAT)

    # Case 1: tiny batch (single tile path).
    B = 8
    feat = jax.random.normal(kf, (B, FEAT), jnp.float32)
    target = jax.random.randint(kt, (B,), 0, OUTPUT, jnp.int32)

    out = jax.block_until_ready(wpi_dec_forward(feat, target, fused))
    ref = wpi_dec_reference(feat, target, params)
    assert out.shape == (B, OUTPUT)
    assert jnp.allclose(out, ref, atol=1e-5, rtol=1e-5)

    # Case 2: non-multiple batch to exercise the batch grid + padding path.
    B2 = 300
    feat2 = jax.random.normal(kf2, (B2, FEAT), jnp.float32)
    target2 = jax.random.randint(kt2, (B2,), 0, OUTPUT, jnp.int32)

    out2 = jax.block_until_ready(wpi_dec_forward(feat2, target2, fused,
                                                 tile_b=128))
    ref2 = wpi_dec_reference(feat2, target2, params)
    assert out2.shape == (B2, OUTPUT)
    assert jnp.allclose(out2, ref2, atol=1e-5, rtol=1e-5)

    print("KERNEL_OK")
</pallas_src>

<mosaic_0001>
module attributes {stable_mosaic.version = 11 : i64} {
  func.func @wpi_dec_kernel(%arg0: i32, %arg1: memref<8x24xf32, #tpu.memory_space<vmem>>, %arg2: memref<8x1xi32, #tpu.memory_space<vmem>>, %arg3: memref<24x128xf32, #tpu.memory_space<vmem>>, %arg4: memref<8x128xf32, #tpu.memory_space<vmem>>, %arg5: memref<1x128xf32, #tpu.memory_space<vmem>>, %arg6: memref<128x128xf32, #tpu.memory_space<vmem>>, %arg7: memref<1x128xf32, #tpu.memory_space<vmem>>, %arg8: memref<128x128xf32, #tpu.memory_space<vmem>>, %arg9: memref<1x128xf32, #tpu.memory_space<vmem>>, %arg10: memref<8x128xf32, #tpu.memory_space<vmem>>) attributes {dimension_semantics = [#tpu.dimension_semantics<parallel>], iteration_bounds = array<i64: 1>, scalar_prefetch = 0 : i64, scratch_operands = 0 : i64, tpu.core_type = #tpu.core_type<tc>, window_params = [{transform_indices = @transform_0, window_bounds = array<i64: 8, 24>}, {transform_indices = @transform_1, window_bounds = array<i64: 8, 1>}, {pipeline_mode = #tpu.pipeline_mode<synchronous>, transform_indices = @transform_2, window_bounds = array<i64: 24, 128>}, {pipeline_mode = #tpu.pipeline_mode<synchronous>, transform_indices = @transform_3, window_bounds = array<i64: 8, 128>}, {pipeline_mode = #tpu.pipeline_mode<synchronous>, transform_indices = @transform_4, window_bounds = array<i64: 1, 128>}, {pipeline_mode = #tpu.pipeline_mode<synchronous>, transform_indices = @transform_5, window_bounds = array<i64: 128, 128>}, {pipeline_mode = #tpu.pipeline_mode<synchronous>, transform_indices = @transform_6, window_bounds = array<i64: 1, 128>}, {pipeline_mode = #tpu.pipeline_mode<synchronous>, transform_indices = @transform_7, window_bounds = array<i64: 128, 128>}, {pipeline_mode = #tpu.pipeline_mode<synchronous>, transform_indices = @transform_8, window_bounds = array<i64: 1, 128>}, {transform_indices = @transform_9, window_bounds = array<i64: 8, 128>}]} {
    %c0 = arith.constant 0 : index
    %c0_0 = arith.constant 0 : index
    %0 = vector.load %arg1[%c0, %c0_0] : memref<8x24xf32, #tpu.memory_space<vmem>>, vector<8x24xf32>
    %c0_1 = arith.constant 0 : index
    %c0_2 = arith.constant 0 : index
    %1 = vector.load %arg2[%c0_1, %c0_2] : memref<8x1xi32, #tpu.memory_space<vmem>>, vector<8x1xi32>
    %2 = tpu.iota {dimensions = array<i32: 1>} : vector<8x8xi32>
    %3 = vector.broadcast %1 : vector<8x1xi32> to vector<8x8xi32>
    %4 = arith.cmpi eq, %3, %2 : vector<8x8xi32>
    %5 = arith.extui %4 : vector<8x8xi1> to vector<8x8xi32>
    %6 = arith.sitofp %5 : vector<8x8xi32> to vector<8x8xf32>
    %c0_3 = arith.constant 0 : index
    %c0_4 = arith.constant 0 : index
    %7 = vector.load %arg3[%c0_3, %c0_4] : memref<24x128xf32, #tpu.memory_space<vmem>>, vector<24x128xf32>
    %cst = arith.constant dense<0.000000e+00> : vector<8x128xf32>
    %8 = tpu.matmul %0, %7, %cst {dimension_numbers = #tpu.dot_dimension_numbers<[1], [0], [0], [1], [0, 0, 1, 1], [], []>} : vector<8x24xf32>, vector<24x128xf32>, vector<8x128xf32> -> vector<8x128xf32>
    %c0_5 = arith.constant 0 : index
    %c0_6 = arith.constant 0 : index
    %9 = vector.load %arg4[%c0_5, %c0_6] : memref<8x128xf32, #tpu.memory_space<vmem>>, vector<8x128xf32>
    %cst_7 = arith.constant dense<0.000000e+00> : vector<8x128xf32>
    %10 = tpu.matmul %6, %9, %cst_7 {dimension_numbers = #tpu.dot_dimension_numbers<[1], [0], [0], [1], [0, 0, 1, 1], [], []>} : vector<8x8xf32>, vector<8x128xf32>, vector<8x128xf32> -> vector<8x128xf32>
    %11 = arith.addf %8, %10 : vector<8x128xf32>
    %c0_8 = arith.constant 0 : index
    %c0_9 = arith.constant 0 : index
    %12 = vector.load %arg5[%c0_8, %c0_9] : memref<1x128xf32, #tpu.memory_space<vmem>>, vector<1x128xf32>
    %13 = vector.broadcast %12 : vector<1x128xf32> to vector<8x128xf32>
    %14 = arith.addf %11, %13 : vector<8x128xf32>
    %15 = math.tanh %14 : vector<8x128xf32>
    %c0_10 = arith.constant 0 : index
    %c0_11 = arith.constant 0 : index
    %16 = vector.load %arg6[%c0_10, %c0_11] : memref<128x128xf32, #tpu.memory_space<vmem>>, vector<128x128xf32>
    %cst_12 = arith.constant dense<0.000000e+00> : vector<8x128xf32>
    %17 = tpu.matmul %15, %16, %cst_12 {dimension_numbers = #tpu.dot_dimension_numbers<[1], [0], [0], [1], [0, 0, 1, 1], [], []>} : vector<8x128xf32>, vector<128x128xf32>, vector<8x128xf32> -> vector<8x128xf32>
    %c0_13 = arith.constant 0 : index
    %c0_14 = arith.constant 0 : index
    %18 = vector.load %arg7[%c0_13, %c0_14] : memref<1x128xf32, #tpu.memory_space<vmem>>, vector<1x128xf32>
    %19 = vector.broadcast %18 : vector<1x128xf32> to vector<8x128xf32>
    %20 = arith.addf %17, %19 : vector<8x128xf32>
    %21 = math.tanh %20 : vector<8x128xf32>
    %c0_15 = arith.constant 0 : index
    %c0_16 = arith.constant 0 : index
    %22 = vector.load %arg8[%c0_15, %c0_16] : memref<128x128xf32, #tpu.memory_space<vmem>>, vector<128x128xf32>
    %cst_17 = arith.constant dense<0.000000e+00> : vector<8x128xf32>
    %23 = tpu.matmul %21, %22, %cst_17 {dimension_numbers = #tpu.dot_dimension_numbers<[1], [0], [0], [1], [0, 0, 1, 1], [], []>} : vector<8x128xf32>, vector<128x128xf32>, vector<8x128xf32> -> vector<8x128xf32>
    %c0_18 = arith.constant 0 : index
    %c0_19 = arith.constant 0 : index
    %24 = vector.load %arg9[%c0_18, %c0_19] : memref<1x128xf32, #tpu.memory_space<vmem>>, vector<1x128xf32>
    %25 = vector.broadcast %24 : vector<1x128xf32> to vector<8x128xf32>
    %26 = arith.addf %23, %25 : vector<8x128xf32>
    %27 = arith.negf %26 : vector<8x128xf32>
    %28 = math.exp %27 : vector<8x128xf32>
    %cst_20 = arith.constant 1.000000e+00 : f32
    %29 = vector.broadcast %cst_20 : f32 to vector<8x128xf32>
    %30 = arith.addf %29, %28 : vector<8x128xf32>
    %31 = arith.divf %29, %30 : vector<8x128xf32>
    %c0_21 = arith.constant 0 : index
    %c0_22 = arith.constant 0 : index
    %32 = vector.load %arg10[%c0_21, %c0_22] : memref<8x128xf32, #tpu.memory_space<vmem>>, vector<8x128xf32>
    tpu.vector_store %arg10[%c0_21, %c0_22], %31 {strides = array<i32>} : memref<8x128xf32, #tpu.memory_space<vmem>>, vector<8x128xf32>,
    return
  }
  func.func @transform_0(%arg0: i32) -> (i32, i32) {
    %c0_i32 = arith.constant 0 : i32
    %c0_i32_0 = arith.constant 0 : i32
    return %arg0, %c0_i32 : i32, i32
  }
  func.func @transform_1(%arg0: i32) -> (i32, i32) {
    %c0_i32 = arith.constant 0 : i32
    %c0_i32_0 = arith.constant 0 : i32
    return %arg0, %c0_i32 : i32, i32
  }
  func.func @transform_2(%arg0: i32) -> (i32, i32) {
    %c0_i32 = arith.constant 0 : i32
    %c0_i32_0 = arith.constant 0 : i32
    %c0_i32_1 = arith.constant 0 : i32
    return %c0_i32, %c0_i32_0 : i32, i32
  }
  func.func @transform_3(%arg0: i32) -> (i32, i32) {
    %c0_i32 = arith.constant 0 : i32
    %c0_i32_0 = arith.constant 0 : i32
    %c0_i32_1 = arith.constant 0 : i32
    return %c0_i32, %c0_i32_0 : i32, i32
  }
  func.func @transform_4(%arg0: i32) -> (i32, i32) {
    %c0_i32 = arith.constant 0 : i32
    %c0_i32_0 = arith.constant 0 : i32
    %c0_i32_1 = arith.constant 0 : i32
    return %c0_i32, %c0_i32_0 : i32, i32
  }
  func.func @transform_5(%arg0: i32) -> (i32, i32) {
    %c0_i32 = arith.constant 0 : i32
    %c0_i32_0 = arith.constant 0 : i32
    %c0_i32_1 = arith.constant 0 : i32
    return %c0_i32, %c0_i32_0 : i32, i32
  }
  func.func @transform_6(%arg0: i32) -> (i32, i32) {
    %c0_i32 = arith.constant 0 : i32
    %c0_i32_0 = arith.constant 0 : i32
    %c0_i32_1 = arith.constant 0 : i32
    return %c0_i32, %c0_i32_0 : i32, i32
  }
  func.func @transform_7(%arg0: i32) -> (i32, i32) {
    %c0_i32 = arith.constant 0 : i32
    %c0_i32_0 = arith.constant 0 : i32
    %c0_i32_1 = arith.constant 0 : i32
    return %c0_i32, %c0_i32_0 : i32, i32
  }
  func.func @transform_8(%arg0: i32) -> (i32, i32) {
    %c0_i32 = arith.constant 0 : i32
    %c0_i32_0 = arith.constant 0 : i32
    %c0_i32_1 = arith.constant 0 : i32
    return %c0_i32, %c0_i32_0 : i32, i32
  }
  func.func @transform_9(%arg0: i32) -> (i32, i32) {
    %c0_i32 = arith.constant 0 : i32
    %c0_i32_0 = arith.constant 0 : i32
    return %arg0, %c0_i32 : i32, i32
  }
}

</mosaic_0001>

<llo_original>
// kernel: tpu_custom_call.1
$region0: #{tpu_custom_call.1}
  #allocation0 [shape = 'u32[]', space=smem, size = 0x4, offset = 0x4, fixed_abs, tag = 'smem constant byte address 0x4 - core index']
  #allocation1 [shape = 'u32[72,128]{1,0:T(1,128)}', space=vmem, size = 0x9000, scoped, tag = 'internal scratch']
  %s0 = inlined_call_operand.vmem [shape: f32[8,24], index: 0, kind: input, shape index: {}]
  %s1 = inlined_call_operand.vmem [shape: s32[8,1], index: 1, kind: input, shape index: {}]
  %s2 = inlined_call_operand.hbm [shape: f32[24,128], index: 2, kind: input, shape index: {}]
  %s3 = inlined_call_operand.hbm [shape: f32[8,128], index: 3, kind: input, shape index: {}]
  %s4 = inlined_call_operand.vmem [shape: f32[1,128], index: 4, kind: input, shape index: {}]
  %s5 = inlined_call_operand.hbm [shape: f32[128,128], index: 5, kind: input, shape index: {}]
  %s6 = inlined_call_operand.vmem [shape: f32[1,128], index: 6, kind: input, shape index: {}]
  %s7 = inlined_call_operand.hbm [shape: f32[128,128], index: 7, kind: input, shape index: {}]
  %s8 = inlined_call_operand.vmem [shape: f32[1,128], index: 8, kind: input, shape index: {}]
  %s9 = inlined_call_operand.hbm [shape: f32[8,128], index: 9, kind: output, shape index: {}]
  %s10 = sld [smem:[#allocation0]]
  $region62: #{tpu_custom_call.1} parent=0
    _
  %s12 = ssub.s32 1, %s10
  %s13 = scalar_select 0, %s12, %s10
  $region1: #{tpu_custom_call.1} parent=0
    #allocation2 [shape = 'u8[12288]{0}', space=vmem, size = 0x3000, scoped, tag = 'input window, operand 2, single buffered']
    #allocation3 [shape = 's32[1]{0}', space=sflag, size = 0x4, scoped, tag = 'scoped memory for tpu_custom_call.1']
    #allocation4 [shape = 's32[1]{0}', space=sflag, size = 0x4, scoped, tag = 'scoped memory for tpu_custom_call.1']
    #allocation5 [shape = 'u8[4096]{0}', space=vmem, size = 0x1000, scoped, tag = 'input window, operand 3, single buffered']
    #allocation6 [shape = 's32[1]{0}', space=sflag, size = 0x4, scoped, tag = 'scoped memory for tpu_custom_call.1']
    #allocation7 [shape = 'u8[65536]{0}', space=vmem, size = 0x10000, scoped, tag = 'input window, operand 5, single buffered']
    #allocation8 [shape = 'u8[65536]{0}', space=vmem, size = 0x10000, scoped, tag = 'input window, operand 7, single buffered']
    #allocation9 [shape = 's32[1]{0}', space=sflag, size = 0x4, scoped, tag = 'scoped memory for tpu_custom_call.1']
    #allocation10 [shape = 'u8[4096]{0}', space=vmem, size = 0x1000, scoped, tag = 'output window, operand 0, single buffered']
    %14 = vsyncpa [#allocation3], 0
    %15 = vsyncpa [#allocation6], 0
    %16 = vsyncpa [#allocation9], 0
    %17 = vsyncpa [#allocation4], 0
    // Predicated region
    $region2: #{tpu_custom_call.1} parent=1 // pred_check
      _
    $region3: #{tpu_custom_call.1} parent=1 // pred_check_branch
      %19 = sbr.rel (0) target = $region5
    $region4: #{tpu_custom_call.1} parent=1 // pred_region
      _
    $region5: #{tpu_custom_call.1} parent=1 // pred_fallthru
      _
    // Predicated region
    $region6: #{tpu_custom_call.1} parent=1 // pred_check
      _
    $region7: #{tpu_custom_call.1} parent=1 // pred_check_branch
      %21 = sbr.rel (0) target = $region9
    $region8: #{tpu_custom_call.1} parent=1 // pred_region
      _
    $region9: #{tpu_custom_call.1} parent=1 // pred_fallthru
      _
    // Predicated region
    $region10: #{tpu_custom_call.1} parent=1 // pred_check
      _
    $region11: #{tpu_custom_call.1} parent=1 // pred_check_branch
      %23 = sbr.rel (0) target = $region13
    $region12: #{tpu_custom_call.1} parent=1 // pred_region
      %25 = vsyncadd [#allocation3], 0
      %s26 = sshll.u32 %s2, 4
      %s27 = int_to_ptr.hbm [resolvable:$true] %s26
      %s28 = sshll.u32 [#allocation2], 4
      %s29 = int_to_ptr.vmem [resolvable:$true] %s28
      %34 = dma.hbm_to_vmem [thread:$0]  %s27, 384, %s29, [#allocation3], 128, 128, 8
    $region13: #{tpu_custom_call.1} parent=1 // pred_fallthru
      _
    // Predicated region
    $region14: #{tpu_custom_call.1} parent=1 // pred_check
      _
    $region15: #{tpu_custom_call.1} parent=1 // pred_check_branch
      %36 = sbr.rel (0) target = $region17
    $region16: #{tpu_custom_call.1} parent=1 // pred_region
      %38 = vsyncadd [#allocation6], 0
      %s40 = sshll.u32 %s3, 4
      %s41 = int_to_ptr.hbm [resolvable:$true] %s40
      %s42 = sshll.u32 [#allocation5], 4
      %s43 = int_to_ptr.vmem [resolvable:$true] %s42
      %45 = dma.hbm_to_vmem [thread:$0]  %s41, 128, %s43, [#allocation6]
    $region17: #{tpu_custom_call.1} parent=1 // pred_fallthru
      _
    // Predicated region
    $region18: #{tpu_custom_call.1} parent=1 // pred_check
      _
    $region19: #{tpu_custom_call.1} parent=1 // pred_check_branch
      %47 = sbr.rel (0) target = $region21
    $region20: #{tpu_custom_call.1} parent=1 // pred_region
      _
    $region21: #{tpu_custom_call.1} parent=1 // pred_fallthru
      _
    // Predicated region
    $region22: #{tpu_custom_call.1} parent=1 // pred_check
      _
    $region23: #{tpu_custom_call.1} parent=1 // pred_check_branch
      %49 = sbr.rel (0) target = $region25
    $region24: #{tpu_custom_call.1} parent=1 // pred_region
      %51 = vsyncadd [#allocation6], 0
      %s52 = sshll.u32 %s5, 4
      %s53 = int_to_ptr.hbm [resolvable:$true] %s52
      %s54 = sshll.u32 [#allocation7], 4
      %s55 = int_to_ptr.vmem [resolvable:$true] %s54
      %60 = dma.hbm_to_vmem [thread:$0]  %s53, 2048, %s55, [#allocation6], 128, 128, 8
    $region25: #{tpu_custom_call.1} parent=1 // pred_fallthru
      _
    // Predicated region
    $region26: #{tpu_custom_call.1} parent=1 // pred_check
      _
    $region27: #{tpu_custom_call.1} parent=1 // pred_check_branch
      %62 = sbr.rel (0) target = $region29
    $region28: #{tpu_custom_call.1} parent=1 // pred_region
      _
    $region29: #{tpu_custom_call.1} parent=1 // pred_fallthru
      _
    // Predicated region
    $region30: #{tpu_custom_call.1} parent=1 // pred_check
      _
    $region31: #{tpu_custom_call.1} parent=1 // pred_check_branch
      %64 = sbr.rel (0) target = $region33
    $region32: #{tpu_custom_call.1} parent=1 // pred_region
      %66 = vsyncadd [#allocation9], 0
      %s67 = sshll.u32 %s7, 4
      %s68 = int_to_ptr.hbm [resolvable:$true] %s67
      %s69 = sshll.u32 [#allocation8], 4
      %s70 = int_to_ptr.vmem [resolvable:$true] %s69
      %75 = dma.hbm_to_vmem [thread:$0]  %s68, 2048, %s70, [#allocation9], 128, 128, 8
    $region33: #{tpu_custom_call.1} parent=1 // pred_fallthru
      _
    // Predicated region
    $region34: #{tpu_custom_call.1} parent=1 // pred_check
      _
    $region35: #{tpu_custom_call.1} parent=1 // pred_check_branch
      %77 = sbr.rel (0) target = $region37
    $region36: #{tpu_custom_call.1} parent=1 // pred_region
      _
    $region37: #{tpu_custom_call.1} parent=1 // pred_fallthru
      _
    // Predicated region
    $region38: #{tpu_custom_call.1} parent=1 // pred_check
      _
    $region39: #{tpu_custom_call.1} parent=1 // pred_check_branch
      %79 = sbr.rel (0) target = $region41
    $region40: #{tpu_custom_call.1} parent=1 // pred_region
      %81 = dma.done [#allocation3], 384
    $region41: #{tpu_custom_call.1} parent=1 // pred_fallthru
      _
    // Predicated region
    $region42: #{tpu_custom_call.1} parent=1 // pred_check
      _
    $region43: #{tpu_custom_call.1} parent=1 // pred_check_branch
      %83 = sbr.rel (0) target = $region45
    $region44: #{tpu_custom_call.1} parent=1 // pred_region
      %85 = dma.done [#allocation6], 128
    $region45: #{tpu_custom_call.1} parent=1 // pred_fallthru
      _
    // Predicated region
    $region46: #{tpu_custom_call.1} parent=1 // pred_check
      _
    $region47: #{tpu_custom_call.1} parent=1 // pred_check_branch
      %87 = sbr.rel (0) target = $region49
    $region48: #{tpu_custom_call.1} parent=1 // pred_region
      %89 = dma.done [#allocation6], 2048
    $region49: #{tpu_custom_call.1} parent=1 // pred_fallthru
      _
    // Predicated region
    $region50: #{tpu_custom_call.1} parent=1 // pred_check
      _
    $region51: #{tpu_custom_call.1} parent=1 // pred_check_branch
      %91 = sbr.rel (0) target = $region53
    $region52: #{tpu_custom_call.1} parent=1 // pred_region
      %93 = dma.done [#allocation9], 2048
    $region53: #{tpu_custom_call.1} parent=1 // pred_fallthru
      _
    %v94 = vld [vmem:[%s0] sm:$0xff]
    %v95 = vld [vmem:[%s1] sm:$0xff]
    %v96 = vlaneseq
    %v97 = vand.u32 %v96, 127
    %98 = vset.pattern.permute.xlu0 0
    %99 = vperm.xlu0 %98, %v95
    %v100 = vpop.permute.xlu0 %99
    %vm101 = vcmp.eq.s32.totalorder %v100, %v97
    %v102 = vsel %vm101, 1, 0
    %v103 = vcvt.s32.f32 %v102
    %v104 = vld [vmem:[#allocation2] sm:$0xff]
    %v105 = vld [vmem:[#allocation2 + $0x8] sm:$0xff]
    %v106 = vld [vmem:[#allocation2 + $0x10] sm:$0xff]
    %v107 = vld [vmem:[#allocation5] sm:$0xff]
    %vm108 = vcmask 64512
    %v110 = vsel %vm108, %v103, 0
    %112 = vmatpush.msra.mxu0 0.0
    %113 = vmatpush.msra.mxu0 0.0
    %114 = vmatpush.msra.mxu0 0.0
    %115 = vmatpush.msra.mxu0 0.0
    %116 = vmatpush.msra.mxu0 0.0
    %117 = vmatpush.msra.mxu0 0.0
    %118 = vmatpush.msra.mxu0 0.0
    %119 = vmatpush.msra.mxu0 0.0
    %120 = vmatpush.msra.mxu0 0.0
    %121 = vmatpush.msra.mxu0 0.0
    %122 = vmatpush.msra.mxu0 0.0
    %123 = vmatpush.msra.mxu0 0.0
    %124 = vmatpush.msra.mxu0 0.0
    %125 = vmatpush.msra.mxu0 0.0
    %126 = vmatpush.msra.mxu0 0.0
    %127 = vmatpush.msra.mxu0 %v107
    %128 = vmatmul.f32.gmra.mxu0 %v110
    %v129 = vpop.f32.mrf.mxu0
    %v130 = vadd.f32 0.0, %v129
    %131 = vdwg.mxu0
    %vm132 = vcmask 195584
    %v134 = vsel %vm132, %v94, 0
    %136 = vmatpush.msra.mxu0 0.0
    %137 = vmatpush.msra.mxu0 0.0
    %138 = vmatpush.msra.mxu0 0.0
    %139 = vmatpush.msra.mxu0 0.0
    %140 = vmatpush.msra.mxu0 0.0
    %141 = vmatpush.msra.mxu0 0.0
    %142 = vmatpush.msra.mxu0 0.0
    %143 = vmatpush.msra.mxu0 0.0
    %144 = vmatpush.msra.mxu0 0.0
    %145 = vmatpush.msra.mxu0 0.0
    %146 = vmatpush.msra.mxu0 0.0
    %147 = vmatpush.msra.mxu0 0.0
    %148 = vmatpush.msra.mxu0 0.0
    %149 = vmatpush.msra.mxu0 %v106
    %150 = vmatpush.msra.mxu0 %v105
    %151 = vmatpush.msra.mxu0 %v104
    %152 = vmatmul.f32.gmra.mxu0 %v134
    %v153 = vpop.f32.mrf.mxu0
    %v154 = vadd.f32 %v130, %v153
    %155 = vdwg.mxu0
    %v156 = vld [vmem:[%s4] sm:$0x1]
    %v158 = vperm.slane %v156, 0
    %v160 = vadd.f32 %v154, %v158
    %v161 = vtanh.pop %v160
    %v162 = vld [vmem:[#allocation7] sm:$0xff]
    %v163 = vld [vmem:[#allocation7 + $0x8] sm:$0xff]
    %v164 = vld [vmem:[#allocation7 + $0x10] sm:$0xff]
    %v165 = vld [vmem:[#allocation7 + $0x18] sm:$0xff]
    %v166 = vld [vmem:[#allocation7 + $0x20] sm:$0xff]
    %v167 = vld [vmem:[#allocation7 + $0x28] sm:$0xff]
    %v168 = vld [vmem:[#allocation7 + $0x30] sm:$0xff]
    %v169 = vld [vmem:[#allocation7 + $0x38] sm:$0xff]
    %v170 = vld [vmem:[#allocation7 + $0x40] sm:$0xff]
    %v171 = vld [vmem:[#allocation7 + $0x48] sm:$0xff]
    %v172 = vld [vmem:[#allocation7 + $0x50] sm:$0xff]
    %v173 = vld [vmem:[#allocation7 + $0x58] sm:$0xff]
    %v174 = vld [vmem:[#allocation7 + $0x60] sm:$0xff]
    %v175 = vld [vmem:[#allocation7 + $0x68] sm:$0xff]
    %v176 = vld [vmem:[#allocation7 + $0x70] sm:$0xff]
    %v177 = vld [vmem:[#allocation7 + $0x78] sm:$0xff]
    %v178 = vld [vmem:[%s6] sm:$0x1]
    %v180 = vperm.slane %v178, 0
    %182 = vmatpush.msra.mxu0 %v177
    %183 = vmatpush.msra.mxu0 %v176
    %184 = vmatpush.msra.mxu0 %v175
    %185 = vmatpush.msra.mxu0 %v174
    %186 = vmatpush.msra.mxu0 %v173
    %187 = vmatpush.msra.mxu0 %v172
    %188 = vmatpush.msra.mxu0 %v171
    %189 = vmatpush.msra.mxu0 %v170
    %190 = vmatpush.msra.mxu0 %v169
    %191 = vmatpush.msra.mxu0 %v168
    %192 = vmatpush.msra.mxu0 %v167
    %193 = vmatpush.msra.mxu0 %v166
    %194 = vmatpush.msra.mxu0 %v165
    %195 = vmatpush.msra.mxu0 %v164
    %196 = vmatpush.msra.mxu0 %v163
    %197 = vmatpush.msra.mxu0 %v162
    %198 = vmatmul.f32.gmra.mxu0 %v161
    %v199 = vpop.f32.mrf.mxu0
    %v200 = vadd.f32 %v180, %v199
    %201 = vdwg.mxu0
    %v202 = vtanh.pop %v200
    %v203 = vld [vmem:[#allocation8] sm:$0xff]
    %v204 = vld [vmem:[#allocation8 + $0x8] sm:$0xff]
    %v205 = vld [vmem:[#allocation8 + $0x10] sm:$0xff]
    %v206 = vld [vmem:[#allocation8 + $0x18] sm:$0xff]
    %v207 = vld [vmem:[#allocation8 + $0x20] sm:$0xff]
    %v208 = vld [vmem:[#allocation8 + $0x28] sm:$0xff]
    %v209 = vld [vmem:[#allocation8 + $0x30] sm:$0xff]
    %v210 = vld [vmem:[#allocation8 + $0x38] sm:$0xff]
    %v211 = vld [vmem:[#allocation8 + $0x40] sm:$0xff]
    %v212 = vld [vmem:[#allocation8 + $0x48] sm:$0xff]
    %v213 = vld [vmem:[#allocation8 + $0x50] sm:$0xff]
    %v214 = vld [vmem:[#allocation8 + $0x58] sm:$0xff]
    %v215 = vld [vmem:[#allocation8 + $0x60] sm:$0xff]
    %v216 = vld [vmem:[#allocation8 + $0x68] sm:$0xff]
    %v217 = vld [vmem:[#allocation8 + $0x70] sm:$0xff]
    %v218 = vld [vmem:[#allocation8 + $0x78] sm:$0xff]
    %v219 = vld [vmem:[%s8] sm:$0x1]
    %v221 = vperm.slane %v219, 0
    %223 = vmatpush.msra.mxu0 %v218
    %224 = vmatpush.msra.mxu0 %v217
    %225 = vmatpush.msra.mxu0 %v216
    %226 = vmatpush.msra.mxu0 %v215
    %227 = vmatpush.msra.mxu0 %v214
    %228 = vmatpush.msra.mxu0 %v213
    %229 = vmatpush.msra.mxu0 %v212
    %230 = vmatpush.msra.mxu0 %v211
    %231 = vmatpush.msra.mxu0 %v210
    %232 = vmatpush.msra.mxu0 %v209
    %233 = vmatpush.msra.mxu0 %v208
    %234 = vmatpush.msra.mxu0 %v207
    %235 = vmatpush.msra.mxu0 %v206
    %236 = vmatpush.msra.mxu0 %v205
    %237 = vmatpush.msra.mxu0 %v204
    %238 = vmatpush.msra.mxu0 %v203
    %239 = vmatmul.f32.gmra.mxu0 %v202
    %v240 = vpop.f32.mrf.mxu0
    %v241 = vadd.f32 %v221, %v240
    %242 = vdwg.mxu0
    %v243 = vxor.u32 %v241, 2147483648
    %v244 = vmul.f32 %v243, 1.442695
    %v245 = vpow.pop %v244
    %v246 = vadd.f32 %v245, 1.0
    %v247 = vrcp.pop %v246
    %v248 = vmul.f32 %v246, %v247
    %v249 = vsub.f32 1.0, %v248
    %v250 = vmul.f32 %v247, %v249
    %v251 = vadd.f32 %v247, %v250
    %vm252 = vweird.f32 %v246
    %vm253 = vweird.f32 %v247
    %vm254 = vmor %vm252, %vm253
    %v255 = vsel %vm254, %v247, %v251
    %v256 = vand.u32 2147483647, %v246
    %vm257 = vcmp.eq.f32.partialorder %v256, 8.507059e+37
    %v258 = vand.u32 %v246, 2147483648
    %v259 = vor.u32 1.1754944e-38, %v258
    %v260 = vsel %vm257, %v259, %v255
    %v261 = vmul.f32 1.0, %v260
    %262 = vst [vmem:[#allocation10] sm:$0xff] %v261
    // Predicated region
    $region54: #{tpu_custom_call.1} parent=1 // pred_check
      _
    $region55: #{tpu_custom_call.1} parent=1 // pred_check_branch
      %264 = sbr.rel (0) target = $region57
    $region56: #{tpu_custom_call.1} parent=1 // pred_region
      %266 = vsyncadd [#allocation4], 0
      %s268 = sshll.u32 [#allocation10], 4
      %s269 = int_to_ptr.vmem [resolvable:$true] %s268
      %s270 = sshll.u32 %s9, 4
      %s271 = int_to_ptr.hbm [resolvable:$true] %s270
      %273 = dma.vmem_to_hbm [thread:$0]  %s269, 128, %s271, [#allocation4]
    $region57: #{tpu_custom_call.1} parent=1 // pred_fallthru
      _
    // Predicated region
    $region58: #{tpu_custom_call.1} parent=1 // pred_check
      _
    $region59: #{tpu_custom_call.1} parent=1 // pred_check_branch
      %275 = sbr.rel (0) target = $region61
    $region60: #{tpu_custom_call.1} parent=1 // pred_region
      %277 = dma.done [#allocation4], 128
    $region61: #{tpu_custom_call.1} parent=1 // pred_fallthru
      _
    %278 = vsyncpa [#allocation3], 1
    %279 = vsyncpa [#allocation6], 1
    %280 = vsyncpa [#allocation9], 1
    %281 = vsyncpa [#allocation4], 1

</llo_original>
